<compile_context>
chip_gen: v5e
topology: v5e:2x2
jax: 0.10.0
libtpu: 0.0.40
codegen_flags: <defaults>
</compile_context>

<pallas_src>
import functools

import jax
import jax.numpy as jnp
from jax.experimental import pallas as pl
from jax.experimental.pallas import tpu as pltpu

EPS = 1e-5


def _round_up(x: int, m: int) -> int:
    return ((x + m - 1) // m) * m


def _pick_tile(dim_p: int, cap: int, prefer_even_count: bool = False) -> int:
    """Largest multiple of 128 <= cap that divides dim_p (dim_p % 128 == 0).

    With prefer_even_count, prefer a tile giving an even tile count so the
    parallel grid axis shards evenly across v7x's two TensorCores.
    """
    cap = max(128, min(cap, dim_p))
    cap = (cap // 128) * 128
    fallback = None
    for t in range(cap, 127, -128):
        if dim_p % t == 0:
            if not prefer_even_count or (dim_p // t) % 2 == 0:
                return t
            if fallback is None:
                fallback = t
    return fallback if fallback is not None else 128


def _make_kernel(inv_b: float, tk: int, x_resident: bool):
    def kernel(x_ref, w_ref, gamma_ref, beta_ref, o_ref, acc_ref):
        # grid = (F_out tiles [parallel], F_in tiles [arbitrary, last]).
        k = pl.program_id(1)

        @pl.when(k == 0)
        def _():
            acc_ref[...] = jnp.zeros_like(acc_ref)

        if x_resident:
            # x is a single resident (B_p, F_in_p) slab; slice the k-chunk.
            x_blk = x_ref[:, pl.ds(pl.multiple_of(k * tk, 128), tk)]
        else:
            x_blk = x_ref[...]                           # streamed (B_p, tk)

        # Standard (B,K)x(K,N) contraction — weight was pre-transposed once in
        # the wrapper, so no per-step XLU transpose of the weight tile.
        acc_ref[...] += jnp.dot(x_blk, w_ref[...],
                                preferred_element_type=jnp.float32)

        @pl.when(k == pl.num_programs(1) - 1)
        def _():
            y = acc_ref[...]                              # (B_p, tn) f32
            # One-pass batch stats; divide by the TRUE batch size (padded rows
            # are zero and contribute nothing to sum / sum-of-squares).
            mean = jnp.sum(y, axis=0, keepdims=True) * inv_b        # (1, tn)
            ex2 = jnp.sum(y * y, axis=0, keepdims=True) * inv_b     # (1, tn)
            var = jnp.maximum(ex2 - mean * mean, 0.0)               # biased
            # Fused BN affine: one FMA + max over the (B_p, tn) block.
            scale = gamma_ref[...] * jax.lax.rsqrt(var + EPS)
            shift = beta_ref[...] - mean * scale
            o_ref[...] = jnp.maximum(y * scale + shift, 0.0).astype(o_ref.dtype)

    return kernel


def fc_bn_relu(x, weight, bias, gamma, beta, *, tn=None, tk=None,
               use_bf16_matmul=True, weight_buffers=2):
    """x: (B, F_in); weight: (F_out, F_in) PyTorch layout; bias/gamma/beta: (F_out,).

    `bias` is accepted for API parity but unused: under training-mode BatchNorm
    the per-feature bias cancels exactly in the mean subtraction.
    """
    del bias
    B, F_in = x.shape
    F_out = weight.shape[0]
    out_dtype = x.dtype

    # ---- Generation-aware VMEM budget (~75% of physical VMEM). -------------
    try:
        vmem_cap = int(pltpu.get_tpu_info().vmem_capacity_bytes) * 3 // 4
    except Exception:
        vmem_cap = 48 << 20  # conservative fallback: fits v7x's 64 MiB VMEM
    vmem_cap = max(vmem_cap, 16 << 20)

    mat_dtype = jnp.bfloat16 if use_bf16_matmul else jnp.dtype(x.dtype)
    itemsize = jnp.dtype(mat_dtype).itemsize
    out_itemsize = jnp.dtype(out_dtype).itemsize

    # Pad batch to the sublane multiple so reductions/stores use full sublanes.
    sub = 16 if itemsize == 2 else 8
    B_p = _round_up(B, sub)

    # ---- Lane-dense 128-aligned padding + tile selection. -------------------
    if tn is not None:
        F_out_p = _round_up(F_out, max(tn, 128))
    else:
        F_out_p = _round_up(F_out, 128)
        tn = _pick_tile(F_out_p, 512, prefer_even_count=True)
    if tk is not None:
        F_in_p = _round_up(F_in, max(tk, 128))
    else:
        F_in_p = _round_up(F_in, 128)
        tk = _pick_tile(F_in_p, 1024)

    # Keep x resident (fetched once) when it is small vs. the VMEM budget.
    x_resident = 2 * B_p * F_in_p * itemsize <= vmem_cap // 4

    def footprint(tn_, tk_):
        xb = (B_p * F_in_p if x_resident else 2 * B_p * tk_) * itemsize
        wb = max(2, weight_buffers) * tn_ * tk_ * itemsize
        ob = 2 * B_p * tn_ * out_itemsize
        ab = B_p * tn_ * 4
        gb = 4 * 4 * tn_
        return xb + wb + ob + ab + gb

    # B-aware shrink loop (matters for big B on v7x's halved VMEM).
    while footprint(tn, tk) > (vmem_cap * 3) // 4 and tk > 128:
        tk = _pick_tile(F_in_p, tk - 128)
    while footprint(tn, tk) > (vmem_cap * 3) // 4 and tn > 128:
        tn = _pick_tile(F_out_p, tn - 128, prefer_even_count=True)
    if x_resident and footprint(tn, tk) > vmem_cap:
        x_resident = False  # last-resort fallback: stream x instead

    vmem_limit = int(min(vmem_cap, max(footprint(tn, tk) * 3 // 2, 8 << 20)))

    # ---- Pad / cast operands. -----------------------------------------------
    x_p = x
    if B_p != B or F_in_p != F_in:
        x_p = jnp.pad(x, ((0, B_p - B), (0, F_in_p - F_in)))
    # One-time HBM transpose to (F_in, F_out): standard MXU feed, amortized
    # across the whole grid.
    w_t = weight.T
    if F_in_p != F_in or F_out_p != F_out:
        w_t = jnp.pad(w_t, ((0, F_in_p - F_in), (0, F_out_p - F_out)))
    x_p = x_p.astype(mat_dtype)
    w_t = w_t.astype(mat_dtype)
    g_p = jnp.pad(gamma.astype(jnp.float32), (0, F_out_p - F_out)).reshape(1, F_out_p)
    b_p = jnp.pad(beta.astype(jnp.float32), (0, F_out_p - F_out)).reshape(1, F_out_p)

    grid = (F_out_p // tn, F_in_p // tk)

    if x_resident:
        x_spec = pl.BlockSpec((B_p, F_in_p), lambda j, k: (0, 0))
    else:
        x_spec = pl.BlockSpec((B_p, tk), lambda j, k: (0, k))
    if weight_buffers > 2:
        w_spec = pl.BlockSpec((tk, tn), lambda j, k: (k, j),
                              pipeline_mode=pl.Buffered(weight_buffers))
    else:
        w_spec = pl.BlockSpec((tk, tn), lambda j, k: (k, j))

    kernel = _make_kernel(1.0 / B, tk, x_resident)

    out = pl.pallas_call(
        kernel,
        out_shape=jax.ShapeDtypeStruct((B_p, F_out_p), out_dtype),
        grid_spec=pltpu.PrefetchScalarGridSpec(
            num_scalar_prefetch=0,
            grid=grid,
            in_specs=[
                x_spec,                                          # x
                w_spec,                                          # weight.T (in, out)
                pl.BlockSpec((1, tn), lambda j, k: (0, j)),      # gamma
                pl.BlockSpec((1, tn), lambda j, k: (0, j)),      # beta
            ],
            out_specs=pl.BlockSpec((B_p, tn), lambda j, k: (0, j)),
            scratch_shapes=[pltpu.VMEM((B_p, tn), jnp.float32)],
        ),
        compiler_params=pltpu.CompilerParams(
            dimension_semantics=("parallel", "arbitrary"),
            vmem_limit_bytes=vmem_limit,
        ),
    )(x_p, w_t, g_p, b_p)

    if B_p != B or F_out_p != F_out:
        out = out[:B, :F_out]
    return out


def reference(x, weight, bias, gamma, beta):
    # Faithful nn.Linear -> nn.BatchNorm1d(train) -> nn.ReLU forward.
    y = x @ weight.T + bias
    mean = jnp.mean(y, axis=0, keepdims=True)
    var = jnp.mean((y - mean) ** 2, axis=0, keepdims=True)
    y = (y - mean) / jnp.sqrt(var + EPS) * gamma + beta
    return jnp.maximum(y, 0.0)


if __name__ == "__main__":
    B, F_IN, F_OUT = 8, 32, 64

    key = jax.random.PRNGKey(0)
    kx, kw, kb = jax.random.split(key, 3)

    x = jax.random.normal(kx, (B, F_IN), dtype=jnp.float32)

    # Deterministic "PyTorch-like" init: Linear weight/bias ~ U(-1/sqrt(F_in),
    # 1/sqrt(F_in)); BN gamma = 1, beta = 0.
    bound = 1.0 / (F_IN ** 0.5)
    weight = jax.random.uniform(kw, (F_OUT, F_IN), jnp.float32, -bound, bound)
    bias = jax.random.uniform(kb, (F_OUT,), jnp.float32, -bound, bound)
    gamma = jnp.ones((F_OUT,), jnp.float32)
    beta = jnp.zeros((F_OUT,), jnp.float32)

    ref = reference(x, weight, bias, gamma, beta)

    # Exact-precision path (f32 matmul) — tight tolerance.
    out_f32 = fc_bn_relu(x, weight, bias, gamma, beta, use_bf16_matmul=False)
    out_f32 = jax.block_until_ready(out_f32)
    assert out_f32.shape == (B, F_OUT)
    assert jnp.allclose(out_f32, ref, atol=1e-4, rtol=1e-4), float(
        jnp.max(jnp.abs(out_f32 - ref)))

    # Default fast path (bf16 matmul inputs, f32 accumulation/epilogue).
    out_bf16 = fc_bn_relu(x, weight, bias, gamma, beta)
    out_bf16 = jax.block_until_ready(out_bf16)
    assert out_bf16.shape == (B, F_OUT)
    assert jnp.allclose(out_bf16, ref, atol=5e-2, rtol=5e-2), float(
        jnp.max(jnp.abs(out_bf16 - ref)))

    print("KERNEL_OK")
</pallas_src>

<mosaic_0001>
module attributes {stable_mosaic.version = 11 : i64} {
  func.func @kernel(%arg0: i32, %arg1: i32, %arg2: memref<8x128xf32, #tpu.memory_space<vmem>>, %arg3: memref<128x128xf32, #tpu.memory_space<vmem>>, %arg4: memref<1x128xf32, #tpu.memory_space<vmem>>, %arg5: memref<1x128xf32, #tpu.memory_space<vmem>>, %arg6: memref<8x128xf32, #tpu.memory_space<vmem>>, %arg7: memref<8x128xf32, #tpu.memory_space<vmem>>) attributes {dimension_semantics = [#tpu.dimension_semantics<parallel>, #tpu.dimension_semantics<arbitrary>], iteration_bounds = array<i64: 1, 1>, scalar_prefetch = 0 : i64, scratch_operands = 1 : i64, tpu.core_type = #tpu.core_type<tc>, window_params = [{pipeline_mode = #tpu.pipeline_mode<synchronous>, transform_indices = @transform_0, window_bounds = array<i64: 8, 128>}, {transform_indices = @transform_1, window_bounds = array<i64: 128, 128>}, {transform_indices = @transform_2, window_bounds = array<i64: 1, 128>}, {transform_indices = @transform_3, window_bounds = array<i64: 1, 128>}, {transform_indices = @transform_4, window_bounds = array<i64: 8, 128>}]} {
    %c0_i32 = arith.constant 0 : i32
    %0 = arith.cmpi eq, %arg1, %c0_i32 : i32
    %1 = arith.extui %0 : i1 to i32
    %c0_i32_0 = arith.constant 0 : i32
    %2 = arith.cmpi ne, %1, %c0_i32_0 : i32
    scf.if %2 {
      %cst_9 = arith.constant 0.000000e+00 : f32
      %15 = vector.broadcast %cst_9 : f32 to vector<8x128xf32>
      %c0_10 = arith.constant 0 : index
      %c0_11 = arith.constant 0 : index
      %16 = vector.load %arg7[%c0_10, %c0_11] : memref<8x128xf32, #tpu.memory_space<vmem>>, vector<8x128xf32>
      tpu.vector_store %arg7[%c0_10, %c0_11], %15 {strides = array<i32>} : memref<8x128xf32, #tpu.memory_space<vmem>>, vector<8x128xf32>,
    } else {
    }
    %c128_i32 = arith.constant 128 : i32
    %3 = arith.muli %arg1, %c128_i32 : i32
    %4 = tpu.assume_multiple %3, 128 : i32
    %c0 = arith.constant 0 : index
    %5 = arith.index_cast %4 : i32 to index
    %6 = vector.load %arg2[%c0, %5] : memref<8x128xf32, #tpu.memory_space<vmem>>, vector<8x128xf32>
    %c0_1 = arith.constant 0 : index
    %c0_2 = arith.constant 0 : index
    %7 = vector.load %arg7[%c0_1, %c0_2] : memref<8x128xf32, #tpu.memory_space<vmem>>, vector<8x128xf32>
    %c0_3 = arith.constant 0 : index
    %c0_4 = arith.constant 0 : index
    %8 = vector.load %arg3[%c0_3, %c0_4] : memref<128x128xf32, #tpu.memory_space<vmem>>, vector<128x128xf32>
    %cst = arith.constant dense<0.000000e+00> : vector<8x128xf32>
    %9 = tpu.matmul %6, %8, %cst {dimension_numbers = #tpu.dot_dimension_numbers<[1], [0], [0], [1], [0, 0, 1, 1], [], []>} : vector<8x128xf32>, vector<128x128xf32>, vector<8x128xf32> -> vector<8x128xf32>
    %10 = arith.addf %7, %9 : vector<8x128xf32>
    %c0_5 = arith.constant 0 : index
    %c0_6 = arith.constant 0 : index
    %11 = vector.load %arg7[%c0_5, %c0_6] : memref<8x128xf32, #tpu.memory_space<vmem>>, vector<8x128xf32>
    tpu.vector_store %arg7[%c0_5, %c0_6], %10 {strides = array<i32>} : memref<8x128xf32, #tpu.memory_space<vmem>>, vector<8x128xf32>,
    %c0_i32_7 = arith.constant 0 : i32
    %12 = arith.cmpi eq, %arg1, %c0_i32_7 : i32
    %13 = arith.extui %12 : i1 to i32
    %c0_i32_8 = arith.constant 0 : i32
    %14 = arith.cmpi ne, %13, %c0_i32_8 : i32
    scf.if %14 {
      %c0_9 = arith.constant 0 : index
      %c0_10 = arith.constant 0 : index
      %15 = vector.load %arg7[%c0_9, %c0_10] : memref<8x128xf32, #tpu.memory_space<vmem>>, vector<8x128xf32>
      %cst_11 = arith.constant dense<0.000000e+00> : vector<128xf32>
      %16 = vector.multi_reduction <add>, %15, %cst_11 [0] : vector<8x128xf32> to vector<128xf32>
      %17 = vector.shape_cast %16 : vector<128xf32> to vector<1x128xf32>
      %cst_12 = arith.constant 1.250000e-01 : f32
      %18 = vector.broadcast %cst_12 : f32 to vector<1x128xf32>
      %19 = arith.mulf %17, %18 : vector<1x128xf32>
      %20 = arith.mulf %15, %15 : vector<8x128xf32>
      %cst_13 = arith.constant dense<0.000000e+00> : vector<128xf32>
      %21 = vector.multi_reduction <add>, %20, %cst_13 [0] : vector<8x128xf32> to vector<128xf32>
      %22 = vector.shape_cast %21 : vector<128xf32> to vector<1x128xf32>
      %cst_14 = arith.constant 1.250000e-01 : f32
      %23 = vector.broadcast %cst_14 : f32 to vector<1x128xf32>
      %24 = arith.mulf %22, %23 : vector<1x128xf32>
      %25 = arith.mulf %19, %19 : vector<1x128xf32>
      %26 = arith.subf %24, %25 : vector<1x128xf32>
      %cst_15 = arith.constant 0.000000e+00 : f32
      %27 = vector.broadcast %cst_15 : f32 to vector<1x128xf32>
      %28 = arith.maximumf %26, %27 : vector<1x128xf32>
      %c0_16 = arith.constant 0 : index
      %c0_17 = arith.constant 0 : index
      %29 = vector.load %arg4[%c0_16, %c0_17] : memref<1x128xf32, #tpu.memory_space<vmem>>, vector<1x128xf32>
      %cst_18 = arith.constant 9.99999974E-6 : f32
      %30 = vector.broadcast %cst_18 : f32 to vector<1x128xf32>
      %31 = arith.addf %28, %30 : vector<1x128xf32>
      %32 = math.rsqrt %31 : vector<1x128xf32>
      %33 = arith.mulf %29, %32 : vector<1x128xf32>
      %c0_19 = arith.constant 0 : index
      %c0_20 = arith.constant 0 : index
      %34 = vector.load %arg5[%c0_19, %c0_20] : memref<1x128xf32, #tpu.memory_space<vmem>>, vector<1x128xf32>
      %35 = arith.mulf %19, %33 : vector<1x128xf32>
      %36 = arith.subf %34, %35 : vector<1x128xf32>
      %37 = vector.broadcast %33 : vector<1x128xf32> to vector<8x128xf32>
      %38 = arith.mulf %15, %37 : vector<8x128xf32>
      %39 = vector.broadcast %36 : vector<1x128xf32> to vector<8x128xf32>
      %40 = arith.addf %38, %39 : vector<8x128xf32>
      %cst_21 = arith.constant 0.000000e+00 : f32
      %41 = vector.broadcast %cst_21 : f32 to vector<8x128xf32>
      %42 = arith.maximumf %40, %41 : vector<8x128xf32>
      %c0_22 = arith.constant 0 : index
      %c0_23 = arith.constant 0 : index
      %43 = vector.load %arg6[%c0_22, %c0_23] : memref<8x128xf32, #tpu.memory_space<vmem>>, vector<8x128xf32>
      tpu.vector_store %arg6[%c0_22, %c0_23], %42 {strides = array<i32>} : memref<8x128xf32, #tpu.memory_space<vmem>>, vector<8x128xf32>,
    } else {
    }
    return
  }
  func.func @transform_0(%arg0: i32, %arg1: i32) -> (i32, i32) {
    %c0_i32 = arith.constant 0 : i32
    %c0_i32_0 = arith.constant 0 : i32
    %c0_i32_1 = arith.constant 0 : i32
    return %c0_i32, %c0_i32_0 : i32, i32
  }
  func.func @transform_1(%arg0: i32, %arg1: i32) -> (i32, i32) {
    %c0_i32 = arith.constant 0 : i32
    return %arg1, %arg0 : i32, i32
  }
  func.func @transform_2(%arg0: i32, %arg1: i32) -> (i32, i32) {
    %c0_i32 = arith.constant 0 : i32
    %c0_i32_0 = arith.constant 0 : i32
    return %c0_i32, %arg0 : i32, i32
  }
  func.func @transform_3(%arg0: i32, %arg1: i32) -> (i32, i32) {
    %c0_i32 = arith.constant 0 : i32
    %c0_i32_0 = arith.constant 0 : i32
    return %c0_i32, %arg0 : i32, i32
  }
  func.func @transform_4(%arg0: i32, %arg1: i32) -> (i32, i32) {
    %c0_i32 = arith.constant 0 : i32
    %c0_i32_0 = arith.constant 0 : i32
    return %c0_i32, %arg0 : i32, i32
  }
}

</mosaic_0001>

<llo_original>
// kernel: tpu_custom_call.1
$region0: #{tpu_custom_call.1}
  #allocation0 [shape = 'u32[]', space=smem, size = 0x4, offset = 0x4, fixed_abs, tag = 'smem constant byte address 0x4 - core index']
  #allocation1 [shape = 'u32[72,128]{1,0:T(1,128)}', space=vmem, size = 0x9000, scoped, tag = 'internal scratch']
  #allocation2 [shape = 'f32[8,128]{1,0:T(8,128)}', space=vmem, size = 0x1000, scoped, tag = 'scratch operand']
  %s0 = inlined_call_operand.hbm [shape: f32[8,128], index: 0, kind: input, shape index: {}]
  %s1 = inlined_call_operand.hbm [shape: f32[128,128], index: 1, kind: input, shape index: {}]
  %s2 = inlined_call_operand.vmem [shape: f32[1,128], index: 2, kind: input, shape index: {}]
  %s3 = inlined_call_operand.vmem [shape: f32[1,128], index: 3, kind: input, shape index: {}]
  %s4 = inlined_call_operand.hbm [shape: f32[8,128], index: 4, kind: output, shape index: {}]
  %s5 = sld [smem:[#allocation0]]
  $region42: #{tpu_custom_call.1} parent=0
    _
  %s7 = ssub.s32 1, %s5
  %s8 = scalar_select 0, %s7, %s5
  $region1: #{tpu_custom_call.1} parent=0
    #allocation3 [shape = 'u8[4096]{0}', space=vmem, size = 0x1000, scoped, tag = 'input window, operand 0, single buffered']
    #allocation4 [shape = 's32[1]{0}', space=sflag, size = 0x4, scoped, tag = 'scoped memory for tpu_custom_call.1']
    #allocation5 [shape = 's32[1]{0}', space=sflag, size = 0x4, scoped, tag = 'scoped memory for tpu_custom_call.1']
    #allocation6 [shape = 'u8[65536]{0}', space=vmem, size = 0x10000, scoped, tag = 'input window, operand 1, single buffered']
    #allocation7 [shape = 's32[1]{0}', space=sflag, size = 0x4, scoped, tag = 'scoped memory for tpu_custom_call.1']
    #allocation8 [shape = 'u8[4096]{0}', space=vmem, size = 0x1000, scoped, tag = 'output window, operand 0, single buffered']
    %9 = vsyncpa [#allocation4], 0
    %10 = vsyncpa [#allocation7], 0
    %11 = vsyncpa [#allocation5], 0
    // Predicated region
    $region2: #{tpu_custom_call.1} parent=1 // pred_check
      _
    $region3: #{tpu_custom_call.1} parent=1 // pred_check_branch
      %13 = sbr.rel (0) target = $region5
    $region4: #{tpu_custom_call.1} parent=1 // pred_region
      %15 = vsyncadd [#allocation4], 0
      %s17 = sshll.u32 %s0, 4
      %s18 = int_to_ptr.hbm [resolvable:$true] %s17
      %s19 = sshll.u32 [#allocation3], 4
      %s20 = int_to_ptr.vmem [resolvable:$true] %s19
      %22 = dma.hbm_to_vmem [thread:$0]  %s18, 128, %s20, [#allocation4]
    $region5: #{tpu_custom_call.1} parent=1 // pred_fallthru
      _
    // Predicated region
    $region6: #{tpu_custom_call.1} parent=1 // pred_check
      _
    $region7: #{tpu_custom_call.1} parent=1 // pred_check_branch
      %24 = sbr.rel (0) target = $region9
    $region8: #{tpu_custom_call.1} parent=1 // pred_region
      %26 = vsyncadd [#allocation7], 0
      %s27 = sshll.u32 %s1, 4
      %s28 = int_to_ptr.hbm [resolvable:$true] %s27
      %s29 = sshll.u32 [#allocation6], 4
      %s30 = int_to_ptr.vmem [resolvable:$true] %s29
      %35 = dma.hbm_to_vmem [thread:$0]  %s28, 2048, %s30, [#allocation7], 128, 128, 8
    $region9: #{tpu_custom_call.1} parent=1 // pred_fallthru
      _
    // Predicated region
    $region10: #{tpu_custom_call.1} parent=1 // pred_check
      _
    $region11: #{tpu_custom_call.1} parent=1 // pred_check_branch
      %37 = sbr.rel (0) target = $region13
    $region12: #{tpu_custom_call.1} parent=1 // pred_region
      _
    $region13: #{tpu_custom_call.1} parent=1 // pred_fallthru
      _
    // Predicated region
    $region14: #{tpu_custom_call.1} parent=1 // pred_check
      _
    $region15: #{tpu_custom_call.1} parent=1 // pred_check_branch
      %39 = sbr.rel (0) target = $region17
    $region16: #{tpu_custom_call.1} parent=1 // pred_region
      _
    $region17: #{tpu_custom_call.1} parent=1 // pred_fallthru
      _
    // Predicated region
    $region18: #{tpu_custom_call.1} parent=1 // pred_check
      _
    $region19: #{tpu_custom_call.1} parent=1 // pred_check_branch
      %41 = sbr.rel (0) target = $region21
    $region20: #{tpu_custom_call.1} parent=1 // pred_region
      %43 = dma.done [#allocation4], 128
    $region21: #{tpu_custom_call.1} parent=1 // pred_fallthru
      _
    // Predicated region
    $region22: #{tpu_custom_call.1} parent=1 // pred_check
      _
    $region23: #{tpu_custom_call.1} parent=1 // pred_check_branch
      %45 = sbr.rel (0) target = $region25
    $region24: #{tpu_custom_call.1} parent=1 // pred_region
      %47 = dma.done [#allocation7], 2048
    $region25: #{tpu_custom_call.1} parent=1 // pred_fallthru
      _
    %p48 = scmp.eq.s32.totalorder 0, 0
    // Predicated region
    $region26: #{tpu_custom_call.1} parent=1 // pred_check
      %p49 = pneg %p48
    $region27: #{tpu_custom_call.1} parent=1 // pred_check_branch
      %51 = sbr.rel (%p49) target = $region29
    $region28: #{tpu_custom_call.1} parent=1 // pred_region
      %52 = vst [vmem:[#allocation2] sm:$0xff] 0.0
    $region29: #{tpu_custom_call.1} parent=1 // pred_fallthru
      _
    %s53 = smul.u32 0, 128
    %s54 = sshra.s32 %s53, 7
    %s55 = sand.u32 %s53, 127
    %s56 = scalar_lea.vmem [#allocation3], %s54
    %v57 = vld [vmem:[%s56] sm:$0xff]
    %v58 = vld [vmem:[#allocation2] sm:$0xff]
    %v59 = vld [vmem:[#allocation6] sm:$0xff]
    %v60 = vld [vmem:[#allocation6 + $0x8] sm:$0xff]
    %v61 = vld [vmem:[#allocation6 + $0x10] sm:$0xff]
    %v62 = vld [vmem:[#allocation6 + $0x18] sm:$0xff]
    %v63 = vld [vmem:[#allocation6 + $0x20] sm:$0xff]
    %v64 = vld [vmem:[#allocation6 + $0x28] sm:$0xff]
    %v65 = vld [vmem:[#allocation6 + $0x30] sm:$0xff]
    %v66 = vld [vmem:[#allocation6 + $0x38] sm:$0xff]
    %v67 = vld [vmem:[#allocation6 + $0x40] sm:$0xff]
    %v68 = vld [vmem:[#allocation6 + $0x48] sm:$0xff]
    %v69 = vld [vmem:[#allocation6 + $0x50] sm:$0xff]
    %v70 = vld [vmem:[#allocation6 + $0x58] sm:$0xff]
    %v71 = vld [vmem:[#allocation6 + $0x60] sm:$0xff]
    %v72 = vld [vmem:[#allocation6 + $0x68] sm:$0xff]
    %v73 = vld [vmem:[#allocation6 + $0x70] sm:$0xff]
    %v74 = vld [vmem:[#allocation6 + $0x78] sm:$0xff]
    %75 = vmatpush.msra.mxu0 %v74
    %76 = vmatpush.msra.mxu0 %v73
    %77 = vmatpush.msra.mxu0 %v72
    %78 = vmatpush.msra.mxu0 %v71
    %79 = vmatpush.msra.mxu0 %v70
    %80 = vmatpush.msra.mxu0 %v69
    %81 = vmatpush.msra.mxu0 %v68
    %82 = vmatpush.msra.mxu0 %v67
    %83 = vmatpush.msra.mxu0 %v66
    %84 = vmatpush.msra.mxu0 %v65
    %85 = vmatpush.msra.mxu0 %v64
    %86 = vmatpush.msra.mxu0 %v63
    %87 = vmatpush.msra.mxu0 %v62
    %88 = vmatpush.msra.mxu0 %v61
    %89 = vmatpush.msra.mxu0 %v60
    %90 = vmatpush.msra.mxu0 %v59
    %91 = vmatmul.f32.gmra.mxu0 %v57
    %v92 = vpop.f32.mrf.mxu0
    %v93 = vadd.f32 0.0, %v92
    %94 = vdwg.mxu0
    %v95 = vadd.f32 %v58, %v93
    %96 = vst [vmem:[#allocation2] sm:$0xff] %v95
    // Predicated region
    $region30: #{tpu_custom_call.1} parent=1 // pred_check
      %p97 = pneg %p48
    $region31: #{tpu_custom_call.1} parent=1 // pred_check_branch
      %99 = sbr.rel (%p97) target = $region33
    $region32: #{tpu_custom_call.1} parent=1 // pred_region
      %v100 = vld [vmem:[#allocation2] sm:$0xff]
      %v101 = vrot.slane %v100, 4
      %v102 = vadd.f32 %v100, %v101
      %v103 = vrot.slane %v102, 2
      %v104 = vadd.f32 %v102, %v103
      %v105 = vrot.slane %v104, 1
      %v106 = vadd.f32 %v104, %v105
      %v107 = vmul.f32 %v106, 0.125
      %v108 = vmul.f32 %v100, %v100
      %v109 = vrot.slane %v108, 4
      %v110 = vadd.f32 %v108, %v109
      %v111 = vrot.slane %v110, 2
      %v112 = vadd.f32 %v110, %v111
      %v113 = vrot.slane %v112, 1
      %v114 = vadd.f32 %v112, %v113
      %v115 = vmul.f32 %v114, 0.125
      %v116 = vmul.f32 %v107, %v107
      %v117 = vsub.f32 %v115, %v116
      %v118 = vmax.f32 %v117, 0.0
      %v119 = vld [vmem:[%s2] sm:$0x1]
      %v120 = vadd.f32 %v118, 1e-05
      %v121 = vrsqrt.pop %v120
      %v122 = vmul.f32 %v121, %v120
      %v123 = vmul.f32 %v122, %v121
      %v124 = vmul.f32 0.5, %v123
      %v125 = vsub.f32 1.5, %v124
      %v126 = vmul.f32 %v121, %v125
      %vm127 = vweird.f32 %v120
      %vm128 = vweird.f32 %v121
      %vm129 = vmor %vm127, %vm128
      %v130 = vsel %vm129, %v121, %v126
      %v131 = vmul.f32 %v119, %v130
      %v132 = vld [vmem:[%s3] sm:$0x1]
      %v133 = vmul.f32 %v107, %v131
      %v134 = vsub.f32 %v132, %v133
      %v136 = vperm.slane %v131, 0
      %v138 = vmul.f32 %v100, %v136
      %v140 = vperm.slane %v134, 0
      %v142 = vadd.f32 %v138, %v140
      %v143 = vmax.f32 %v142, 0.0
      %144 = vst [vmem:[#allocation8] sm:$0xff] %v143
    $region33: #{tpu_custom_call.1} parent=1 // pred_fallthru
      _
    // Predicated region
    $region34: #{tpu_custom_call.1} parent=1 // pred_check
      _
    $region35: #{tpu_custom_call.1} parent=1 // pred_check_branch
      %146 = sbr.rel (0) target = $region37
    $region36: #{tpu_custom_call.1} parent=1 // pred_region
      %148 = vsyncadd [#allocation5], 0
      %s150 = sshll.u32 [#allocation8], 4
      %s151 = int_to_ptr.vmem [resolvable:$true] %s150
      %s152 = sshll.u32 %s4, 4
      %s153 = int_to_ptr.hbm [resolvable:$true] %s152
      %155 = dma.vmem_to_hbm [thread:$0]  %s151, 128, %s153, [#allocation5]
    $region37: #{tpu_custom_call.1} parent=1 // pred_fallthru
      _
    // Predicated region
    $region38: #{tpu_custom_call.1} parent=1 // pred_check
      _
    $region39: #{tpu_custom_call.1} parent=1 // pred_check_branch
      %157 = sbr.rel (0) target = $region41
    $region40: #{tpu_custom_call.1} parent=1 // pred_region
      %159 = dma.done [#allocation5], 128
    $region41: #{tpu_custom_call.1} parent=1 // pred_fallthru
      _
    %160 = vsyncpa [#allocation4], 1
    %161 = vsyncpa [#allocation7], 1
    %162 = vsyncpa [#allocation5], 1

</llo_original>
